<compile_context>
chip_gen: v6e
topology: v6e:2x2x1
jax: 0.10.0
libtpu: 0.0.40
codegen_flags: <defaults>
</compile_context>

<pallas_src>
import jax
import jax.numpy as jnp
from jax.experimental import pallas as pl
from jax.experimental.pallas import tpu as pltpu

_SCALE = 3.0 / 4.0                   # ((x+2)*3-1)/4 == x*0.75 + 1.25
_BIAS = (2.0 * 3.0 - 1.0) / 4.0

_LANE = 128
_MIB = 1024 * 1024


def _affine_kernel(x_ref, o_ref):
    # Fused scale + bias on the whole VMEM tile.
    o_ref[...] = (x_ref[...] * _SCALE + _BIAS).astype(o_ref.dtype)


def _chip_budget():
    """Returns (tile_bytes_per_buffer, vmem_limit_bytes) per TPU generation."""
    try:
        vmem_cap = int(pltpu.get_tpu_info().vmem_capacity_bytes)
    except Exception:
        vmem_cap = 128 * _MIB
    if vmem_cap <= 64 * _MIB:
        # v7x-class: only 64 MiB physical VMEM/TC but ~3.2 TB/s HBM ->
        # big 8 MiB tiles; pipeline footprint 2x(in+out)x8 = 32 MiB < 40 MiB.
        return 8 * _MIB, 40 * _MIB
    # v5e / v6e: 128 MiB physical VMEM; 6 MiB tiles keep per-step overhead
    # at a few %, and 32 MiB scope covers the 24 MiB pipeline footprint.
    return 6 * _MIB, 32 * _MIB


def _forward_impl(x):
    orig_shape = x.shape
    orig_dtype = x.dtype
    n = x.size

    if n == 0 or not jnp.issubdtype(orig_dtype, jnp.floating):
        # TODO(synk): integer inputs take torch's true-division (-> float) path
        # via plain jnp instead of the Pallas kernel.
        return ((x + 2) * 3 - 1) / 4

    flat = x.reshape(-1)
    rows = n // _LANE
    tail = n - rows * _LANE

    if rows == 0:
        # Fewer than 128 elements: not worth a kernel launch.
        return (flat * _SCALE + _BIAS).astype(orig_dtype).reshape(orig_shape)

    itemsize = jnp.dtype(orig_dtype).itemsize
    # Packed-tile sublane alignment: 8 (f32), 16 (bf16/f16), 32 (int8/fp8).
    align = 8 * max(1, 4 // itemsize)

    tile_bytes, vmem_limit = _chip_budget()
    budget_rows = max(align, (tile_bytes // (_LANE * itemsize)) // align * align)

    tm = min(budget_rows, rows)
    if tm < rows:
        # Multi-block: keep every non-final block a full packed tile.
        tm = max(align, (tm // align) * align)
    # Guarantee >= 2 grid steps on mid-size inputs so both v7x TCs get work.
    half = pl.cdiv(rows, 2)
    if rows >= 2 * align and tm > half:
        tm = max(align, ((half + align - 1) // align) * align)
    grid = (pl.cdiv(rows, tm),)

    # Kernel only covers the 128-aligned prefix (no whole-array pad).
    x2d = flat[: rows * _LANE].reshape(rows, _LANE)

    out2d = pl.pallas_call(
        _affine_kernel,
        out_shape=jax.ShapeDtypeStruct((rows, _LANE), orig_dtype),
        grid_spec=pl.GridSpec(
            grid=grid,
            in_specs=[pl.BlockSpec((tm, _LANE), lambda i: (i, 0))],
            out_specs=pl.BlockSpec((tm, _LANE), lambda i: (i, 0)),
        ),
        compiler_params=pltpu.CompilerParams(
            # Independent row tiles -> shardable across v7x's two TensorCores.
            dimension_semantics=("parallel",),
            vmem_limit_bytes=vmem_limit,
        ),
    )(x2d)

    out_flat = out2d.reshape(-1)
    if tail:
        # Only the <128-element remainder is computed outside the kernel.
        tail_out = (flat[rows * _LANE:] * _SCALE + _BIAS).astype(orig_dtype)
        out_flat = jnp.concatenate([out_flat, tail_out])
    return out_flat.reshape(orig_shape)


# jit: reshapes/slices become bitcasts, dispatch overhead amortized per shape.
pt_module_forward = jax.jit(_forward_impl)


if __name__ == "__main__":
    key = jax.random.PRNGKey(0)
    x = jax.random.normal(key, (2, 4, 16, 16), dtype=jnp.float32)

    y = pt_module_forward(x)
    jax.block_until_ready(y)

    # Reference check against the original op chain (torch semantics).
    y_ref = ((x + 2.0) * 3.0 - 1.0) / 4.0
    assert y.shape == x.shape and y.dtype == x.dtype
    assert jnp.allclose(y, y_ref, atol=1e-5, rtol=1e-5)

    # Also exercise the non-128-aligned (kernel prefix + jnp tail) path.
    x2 = jax.random.normal(jax.random.PRNGKey(1), (5, 131), dtype=jnp.float32)
    y2 = pt_module_forward(x2)
    jax.block_until_ready(y2)
    y2_ref = ((x2 + 2.0) * 3.0 - 1.0) / 4.0
    assert y2.shape == x2.shape and y2.dtype == x2.dtype
    assert jnp.allclose(y2, y2_ref, atol=1e-5, rtol=1e-5)

    print("KERNEL_OK")
</pallas_src>

<mosaic_0001>
module attributes {stable_mosaic.version = 11 : i64} {
  func.func @_affine_kernel(%arg0: i32, %arg1: memref<8x128xf32, #tpu.memory_space<vmem>>, %arg2: memref<8x128xf32, #tpu.memory_space<vmem>>) attributes {dimension_semantics = [#tpu.dimension_semantics<parallel>], iteration_bounds = array<i64: 2>, scalar_prefetch = 0 : i64, scratch_operands = 0 : i64, tpu.core_type = #tpu.core_type<tc>, window_params = [{transform_indices = @transform_0, window_bounds = array<i64: 8, 128>}, {transform_indices = @transform_1, window_bounds = array<i64: 8, 128>}]} {
    %c0 = arith.constant 0 : index
    %c0_0 = arith.constant 0 : index
    %0 = vector.load %arg1[%c0, %c0_0] : memref<8x128xf32, #tpu.memory_space<vmem>>, vector<8x128xf32>
    %cst = arith.constant 7.500000e-01 : f32
    %1 = vector.broadcast %cst : f32 to vector<8x128xf32>
    %2 = arith.mulf %0, %1 : vector<8x128xf32>
    %cst_1 = arith.constant 1.250000e+00 : f32
    %3 = vector.broadcast %cst_1 : f32 to vector<8x128xf32>
    %4 = arith.addf %2, %3 : vector<8x128xf32>
    %c0_2 = arith.constant 0 : index
    %c0_3 = arith.constant 0 : index
    %5 = vector.load %arg2[%c0_2, %c0_3] : memref<8x128xf32, #tpu.memory_space<vmem>>, vector<8x128xf32>
    tpu.vector_store %arg2[%c0_2, %c0_3], %4 {strides = array<i32>} : memref<8x128xf32, #tpu.memory_space<vmem>>, vector<8x128xf32>,
    return
  }
  func.func @transform_0(%arg0: i32) -> (i32, i32) {
    %c0_i32 = arith.constant 0 : i32
    %c0_i32_0 = arith.constant 0 : i32
    return %arg0, %c0_i32 : i32, i32
  }
  func.func @transform_1(%arg0: i32) -> (i32, i32) {
    %c0_i32 = arith.constant 0 : i32
    %c0_i32_0 = arith.constant 0 : i32
    return %arg0, %c0_i32 : i32, i32
  }
}

</mosaic_0001>

<llo_original>
// kernel: _forward_impl.1
$region0: #{_forward_impl.1}
  #allocation0 [shape = 'u32[]', space=smem, size = 0x4, offset = 0x4, fixed_abs, tag = 'smem constant byte address 0x4 - core index']
  #allocation1 [shape = 'u32[144,128]{1,0:T(1,128)}', space=vmem, size = 0x12000, scoped, tag = 'internal scratch']
  %s0 = inlined_call_operand.vmem [shape: f32[16,128], index: 0, kind: input, shape index: {}]
  %s1 = inlined_call_operand.vmem [shape: f32[16,128], index: 1, kind: output, shape index: {}]
  %s2 = sld [smem:[#allocation0]]
  $region37: #{_forward_impl.1} parent=0
    _
  %s4 = ssub.s32 1, %s2
  %s5 = scalar_select 0, %s4, %s2
  loop: start=0, step=1, limit=4
  $region2: #{_forward_impl.1} parent=0 // loop_pre_header
    _
  $region3: #{_forward_impl.1} parent=0 // loop_header
    %s7 = sphi 0, %s11
    %p8 = scmp.ge.s32.totalorder %s7, 4
    %s17 = sphi 0, %s19
    %s20 = sphi 0, %s17
    %s21 = sphi 0, %s20
    %s37 = sphi 0, %s21
    %s43 = sphi 0, %s45
    %s46 = sphi 0, %s43
    %s47 = sphi 0, %s46
    %s63 = sphi 0, %s47
  $region4: #{_forward_impl.1} parent=0 // loop_header_branch
    %10 = sbr.rel (%p8) target = $region8
  $region5: #{_forward_impl.1} parent=0 // loop_body
    %s12 = ssub.s32 %s7, 1
    %s13 = ssub.s32 %s7, 2
    %s14 = sadd.s32 %s7, 1
    %s15 = ssub.s32 %s7, %s14
    %p16 = scmp.eq.s32.totalorder %s15, 0
    %s18 = sadd.s32 %s17, 1
    %s19 = scalar_select %p16, %s17, %s18
    %p22 = pneg %p16
    %p23 = scmp.eq.s32.totalorder %s7, 1
    %p24 = por %p22, %p23
    %p25 = scmp.ne.s32.totalorder %s17, %s20
    %p26 = scmp.eq.s32.totalorder %s7, 0
    %p27 = por %p25, %p26
    %p28 = scmp.ne.s32.totalorder %s17, %s20
    %p29 = scmp.eq.s32.totalorder %s12, 1
    %p30 = por %p28, %p29
    %p31 = scmp.ne.s32.totalorder %s20, %s21
    %p32 = scmp.eq.s32.totalorder %s12, 0
    %p33 = por %p31, %p32
    %p34 = scmp.ne.s32.totalorder %s20, %s21
    %p35 = scmp.eq.s32.totalorder %s13, 1
    %p36 = por %p34, %p35
    %p38 = scmp.ne.s32.totalorder %s21, %s37
    %p39 = scmp.eq.s32.totalorder %s13, 0
    %p40 = por %p38, %p39
    %s41 = ssub.s32 %s7, %s14
    %p42 = scmp.eq.s32.totalorder %s41, 0
    %s44 = sadd.s32 %s43, 1
    %s45 = scalar_select %p42, %s43, %s44
    %p48 = pneg %p42
    %p49 = scmp.eq.s32.totalorder %s7, 1
    %p50 = por %p48, %p49
    %p51 = scmp.ne.s32.totalorder %s43, %s46
    %p52 = scmp.eq.s32.totalorder %s7, 0
    %p53 = por %p51, %p52
    %p54 = scmp.ne.s32.totalorder %s43, %s46
    %p55 = scmp.eq.s32.totalorder %s12, 1
    %p56 = por %p54, %p55
    %p57 = scmp.ne.s32.totalorder %s46, %s47
    %p58 = scmp.eq.s32.totalorder %s12, 0
    %p59 = por %p57, %p58
    %p60 = scmp.ne.s32.totalorder %s46, %s47
    %p61 = scmp.eq.s32.totalorder %s13, 1
    %p62 = por %p60, %p61
    %p64 = scmp.ne.s32.totalorder %s47, %s63
    %p65 = scmp.eq.s32.totalorder %s13, 0
    %p66 = por %p64, %p65
    %p67 = scmp.le.s32.totalorder 1, %s7
    %p68 = scmp.lt.s32.totalorder %s7, 3
    %p69 = pnand %p67, %p68
    %p70 = pneg %p69
    // Predicated region
    $region9: #{_forward_impl.1} parent=5 // pred_check
      _
    $region10: #{_forward_impl.1} parent=5 // pred_check_branch
      %72 = sbr.rel (%p69) target = $region12
    $region11: #{_forward_impl.1} parent=5 // pred_region
      %s73 = ssub.s32 %s7, 1
    $region12: #{_forward_impl.1} parent=5 // pred_fallthru
      _
    %p74 = scmp.lt.s32.totalorder %s7, 2
    // Predicated region
    $region13: #{_forward_impl.1} parent=5 // pred_check
      %p75 = pneg %p74
    $region14: #{_forward_impl.1} parent=5 // pred_check_branch
      %77 = sbr.rel (%p75) target = $region16
    $region15: #{_forward_impl.1} parent=5 // pred_region
      // Predicated region
      $region17: #{_forward_impl.1} parent=15 // pred_check
        %p78 = pneg %p27
      $region18: #{_forward_impl.1} parent=15 // pred_check_branch
        %80 = sbr.rel (%p78) target = $region20
      $region19: #{_forward_impl.1} parent=15 // pred_region
        %p81 = scmp.lt.s32.totalorder %s7, 1
        %s82 = scalar_select %p81, %s7, 1
        %s83 = smul.addr %s82, 8
        %s84 = scalar_lea.vmem %s0, %s83
      $region20: #{_forward_impl.1} parent=15 // pred_fallthru
        _
    $region16: #{_forward_impl.1} parent=5 // pred_fallthru
      _
    %p85 = scmp.le.s32.totalorder 1, %s7
    %p86 = scmp.lt.s32.totalorder %s7, 3
    %p87 = pnand %p85, %p86
    %p88 = pneg %p87
    // Predicated region
    $region21: #{_forward_impl.1} parent=5 // pred_check
      _
    $region22: #{_forward_impl.1} parent=5 // pred_check_branch
      %90 = sbr.rel (%p87) target = $region24
    $region23: #{_forward_impl.1} parent=5 // pred_region
      %s91 = ssub.s32 %s7, 1
      %p92 = scmp.lt.s32.totalorder %s12, 1
      %s93 = scalar_select %p92, %s12, 1
      %s94 = smul.addr %s93, 8
      %s95 = scalar_lea.vmem %s0, %s94
      %p96 = pneg %p33
      %p97 = pneg %p30
      %p98 = pneg %p59
      %p99 = pneg %p56
      %p100 = scmp.lt.s32.totalorder %s12, 1
      %s101 = scalar_select %p100, %s12, 1
      %s102 = smul.addr %s101, 8
      %s103 = scalar_lea.vmem %s1, %s102
      %p104 = scmp.lt.s32.totalorder %s12, 1
      %s105 = scalar_select %p104, %s12, 1
      %s106 = smul.addr %s105, 8
      %s107 = scalar_lea.vmem %s0, %s106
      %p108 = scmp.lt.s32.totalorder %s12, 1
      %s109 = scalar_select %p108, %s12, 1
      %s110 = smul.addr %s109, 8
      %s111 = scalar_lea.vmem %s1, %s110
      %v112 = vld [vmem:[%s107] sm:$0xff]
      %v113 = vmul.f32 %v112, 0.75
      %v114 = vadd.f32 %v113, 1.25
      %115 = vst [vmem:[%s111] sm:$0xff] %v114
      %p116 = scmp.lt.s32.totalorder %s12, 1
      %s117 = scalar_select %p116, %s12, 1
      %s118 = smul.addr %s117, 8
      %s119 = scalar_lea.vmem %s1, %s118
      // Predicated region
      $region25: #{_forward_impl.1} parent=23 // pred_check
        %p120 = pneg %p56
      $region26: #{_forward_impl.1} parent=23 // pred_check_branch
        %122 = sbr.rel (%p120) target = $region28
      $region27: #{_forward_impl.1} parent=23 // pred_region
        _
      $region28: #{_forward_impl.1} parent=23 // pred_fallthru
        _
    $region24: #{_forward_impl.1} parent=5 // pred_fallthru
      _
    %p123 = scmp.le.s32.totalorder 2, %s7
    // Predicated region
    $region29: #{_forward_impl.1} parent=5 // pred_check
      %p124 = pneg %p123
    $region30: #{_forward_impl.1} parent=5 // pred_check_branch
      %126 = sbr.rel (%p124) target = $region32
    $region31: #{_forward_impl.1} parent=5 // pred_region
      %s127 = ssub.s32 %s7, 2
      // Predicated region
      $region33: #{_forward_impl.1} parent=31 // pred_check
        %p128 = pneg %p62
      $region34: #{_forward_impl.1} parent=31 // pred_check_branch
        %130 = sbr.rel (%p128) target = $region36
      $region35: #{_forward_impl.1} parent=31 // pred_region
        %p131 = scmp.lt.s32.totalorder %s13, 1
        %s132 = scalar_select %p131, %s13, 1
        %s133 = smul.addr %s132, 8
        %s134 = scalar_lea.vmem %s1, %s133
      $region36: #{_forward_impl.1} parent=31 // pred_fallthru
        _
    $region32: #{_forward_impl.1} parent=5 // pred_fallthru
      _
  $region6: #{_forward_impl.1} parent=0 // loop_footer
    %s11 = sadd.s32 1, %s7
  $region7: #{_forward_impl.1} parent=0 // loop_footer_branch
    %6 = sbr.rel target = $region3
  $region8: #{_forward_impl.1} parent=0 // loop_exit
    _

</llo_original>
